<compile_context>
chip_gen: v7x
topology: tpu7x:2x2x1
jax: 0.10.0
libtpu: 0.0.40
codegen_flags: <defaults>
</compile_context>

<pallas_src>
import jax
import jax.numpy as jnp
from jax.experimental import pallas as pl
from jax.experimental.pallas import tpu as pltpu


LANE = 128


def _round_up(n, m):
    return ((n + m - 1) // m) * m


# ----------------------------------------------------------------------------
# K1: conv1 (1x1) with BN1+ReLU prologue and BN2+ReLU epilogue, M-tiled.
# ----------------------------------------------------------------------------

def _conv1_kernel(x_ref, s1_ref, b1_ref, w1_ref, s2_ref, b2_ref, o_ref):
    # BN+ReLU math in f32 (v5e VPU has no bf16), matmul operands in bf16.
    a = jnp.maximum(x_ref[...].astype(jnp.float32) * s1_ref[...] + b1_ref[...], 0.0)
    o1 = jnp.dot(a.astype(jnp.bfloat16), w1_ref[...],
                 preferred_element_type=jnp.float32)
    o_ref[...] = jnp.maximum(o1 * s2_ref[...] + b2_ref[...], 0.0).astype(o_ref.dtype)


def conv1_fused(x2d, s1, b1, w1, s2, b2, tile_m=512):
    m, cin_p = x2d.shape
    cp1 = w1.shape[1]
    m_pad = _round_up(m, tile_m)
    if m_pad != m:
        x2d = jnp.pad(x2d, ((0, m_pad - m), (0, 0)))
    out = pl.pallas_call(
        _conv1_kernel,
        out_shape=jax.ShapeDtypeStruct((m_pad, cp1), jnp.bfloat16),
        grid=(m_pad // tile_m,),
        in_specs=[
            pl.BlockSpec((tile_m, cin_p), lambda i: (i, 0)),
            pl.BlockSpec((1, cin_p), lambda i: (0, 0)),
            pl.BlockSpec((1, cin_p), lambda i: (0, 0)),
            pl.BlockSpec((cin_p, cp1), lambda i: (0, 0)),
            pl.BlockSpec((1, cp1), lambda i: (0, 0)),
            pl.BlockSpec((1, cp1), lambda i: (0, 0)),
        ],
        out_specs=pl.BlockSpec((tile_m, cp1), lambda i: (i, 0)),
        compiler_params=pltpu.CompilerParams(dimension_semantics=("parallel",)),
    )(x2d, s1, b1, w1, s2, b2)
    return out[:m]


# ----------------------------------------------------------------------------
# K2: 3x3 conv (9 in-kernel shifted-window matmuls, f32 VMEM accumulator)
#     + BN3+ReLU + 1x1 conv3 + global-average-pool row sums.  Grid = (B,).
# ----------------------------------------------------------------------------

def conv2_conv3_pool(o1b_pad, w2, w3, s3, b3, stride):
    b, hp2, wp2, cp1 = o1b_pad.shape
    h, w = hp2 - 2, wp2 - 2
    ho = (h - 1) // stride + 1
    wo = (w - 1) // stride + 1
    s_out = ho * wo
    cp4 = w3.shape[1]

    # TODO(synk): for very large images, tile the h dimension as well instead of
    # holding a whole padded image block per grid step.

    def kernel(x_ref, w2_ref, w3_ref, s3_ref, b3_ref, o3_ref, sum_ref, acc_ref):
        acc_ref[...] = jnp.zeros_like(acc_ref)
        for kh in range(3):
            for kw in range(3):
                if stride == 1:
                    patch = x_ref[0, kh:kh + ho, kw:kw + wo, :]
                else:
                    # TODO(synk): stride > 1 uses strided window reads
                    # (pl.ds(stride=)); only the stride == 1 path is validated
                    # by the test below.
                    patch = x_ref[0, pl.ds(kh, ho, stride=stride),
                                  pl.ds(kw, wo, stride=stride), :]
                a = patch.reshape(ho * wo, cp1)
                acc_ref[...] += jnp.dot(a, w2_ref[kh * 3 + kw],
                                        preferred_element_type=jnp.float32)
        # BN3 + ReLU in f32, then the 1x1 conv3 on the MXU in bf16.
        o2b = jnp.maximum(acc_ref[...] * s3_ref[...] + b3_ref[...], 0.0)
        o3 = jnp.dot(o2b.astype(jnp.bfloat16), w3_ref[...],
                     preferred_element_type=jnp.float32)
        o3_ref[0] = o3
        # Global-average-pool partial: row sums (divided by true H*W in K3).
        sum_ref[0] = jnp.sum(o3, axis=0, keepdims=True)

    o3, sums = pl.pallas_call(
        kernel,
        out_shape=(jax.ShapeDtypeStruct((b, s_out, cp4), jnp.float32),
                   jax.ShapeDtypeStruct((b, 1, cp4), jnp.float32)),
        grid=(b,),
        in_specs=[
            pl.BlockSpec((1, hp2, wp2, cp1), lambda i: (i, 0, 0, 0)),
            pl.BlockSpec((9, cp1, cp1), lambda i: (0, 0, 0)),
            pl.BlockSpec((cp1, cp4), lambda i: (0, 0)),
            pl.BlockSpec((1, cp1), lambda i: (0, 0)),
            pl.BlockSpec((1, cp1), lambda i: (0, 0)),
        ],
        out_specs=(pl.BlockSpec((1, s_out, cp4), lambda i: (i, 0, 0)),
                   pl.BlockSpec((1, 1, cp4), lambda i: (i, 0, 0))),
        scratch_shapes=[pltpu.VMEM((s_out, cp1), jnp.float32)],
        compiler_params=pltpu.CompilerParams(
            dimension_semantics=("parallel",),
            vmem_limit_bytes=48 * 1024 * 1024),
    )(o1b_pad, w2, w3, s3, b3)
    return o3, sums, ho, wo


# ----------------------------------------------------------------------------
# K3: SE attention head (pool finalize + FC1+ReLU + FC2 + att projection).
# ----------------------------------------------------------------------------

def se_attention(sums, att_p, wfc1, wfc2, watt, inv_area):
    b, cp4 = sums.shape

    def kernel(sum_ref, att_ref, w1_ref, w2_ref, wa_ref, o_ref):
        y = (sum_ref[...] * inv_area).astype(jnp.bfloat16)
        hid = jnp.maximum(
            jnp.dot(y, w1_ref[...], preferred_element_type=jnp.float32), 0.0)
        o_ref[...] = (
            jnp.dot(hid.astype(jnp.bfloat16), w2_ref[...],
                    preferred_element_type=jnp.float32)
            + jnp.dot(att_ref[...], wa_ref[...],
                      preferred_element_type=jnp.float32))

    return pl.pallas_call(
        kernel,
        out_shape=jax.ShapeDtypeStruct((b, cp4), jnp.float32),
    )(sums, att_p, wfc1, wfc2, watt)


# ----------------------------------------------------------------------------
# K4: fused shortcut (BN1+ReLU prologue + strided 1x1 conv) + sigmoid gate +
#     residual add.  Grid = (B,).
# ----------------------------------------------------------------------------

def shortcut_gate_add(xs, s1, b1, wsc, all_att, o3):
    b, s_out, cin_p = xs.shape
    cp4 = wsc.shape[1]

    def kernel(xs_ref, s1_ref, b1_ref, wsc_ref, att_ref, o3_ref, out_ref):
        a = jnp.maximum(
            xs_ref[0].astype(jnp.float32) * s1_ref[...] + b1_ref[...], 0.0)
        sc = jnp.dot(a.astype(jnp.bfloat16), wsc_ref[...],
                     preferred_element_type=jnp.float32)
        gate = jax.nn.sigmoid(att_ref[0])           # (1, cp4)
        out_ref[0] = o3_ref[0] * gate + sc

    return pl.pallas_call(
        kernel,
        out_shape=jax.ShapeDtypeStruct((b, s_out, cp4), jnp.float32),
        grid=(b,),
        in_specs=[
            pl.BlockSpec((1, s_out, cin_p), lambda i: (i, 0, 0)),
            pl.BlockSpec((1, cin_p), lambda i: (0, 0)),
            pl.BlockSpec((1, cin_p), lambda i: (0, 0)),
            pl.BlockSpec((cin_p, cp4), lambda i: (0, 0)),
            pl.BlockSpec((1, 1, cp4), lambda i: (i, 0, 0)),
            pl.BlockSpec((1, s_out, cp4), lambda i: (i, 0, 0)),
        ],
        out_specs=pl.BlockSpec((1, s_out, cp4), lambda i: (i, 0, 0)),
        compiler_params=pltpu.CompilerParams(dimension_semantics=("parallel",)),
    )(xs, s1, b1, wsc, all_att.reshape(b, 1, cp4), o3)


# ----------------------------------------------------------------------------
# Parameter construction / layout prep / forward
# ----------------------------------------------------------------------------

def make_params(key, in_planes, planes, reduction=16, eps=1e-5):
    """Raw PyTorch-layout parameters (BN already folded to scale/shift)."""
    c4 = 4 * planes
    ks = jax.random.split(key, 10)

    def bn_params(k, c):
        k1, k2, k3, k4 = jax.random.split(k, 4)
        gamma = 1.0 + 0.1 * jax.random.normal(k1, (c,), jnp.float32)
        beta = 0.1 * jax.random.normal(k2, (c,), jnp.float32)
        mean = 0.1 * jax.random.normal(k3, (c,), jnp.float32)
        var = jnp.abs(jax.random.normal(k4, (c,), jnp.float32)) + 0.5
        scale = gamma / jnp.sqrt(var + eps)
        shift = beta - mean * scale
        return scale, shift

    P = {"planes": planes, "in_planes": in_planes, "reduction": reduction}
    P["bn1_scale"], P["bn1_shift"] = bn_params(ks[0], in_planes)
    P["bn2_scale"], P["bn2_shift"] = bn_params(ks[1], planes)
    P["bn3_scale"], P["bn3_shift"] = bn_params(ks[2], planes)
    P["w1_oihw"] = 0.2 * jax.random.normal(ks[3], (planes, in_planes, 1, 1), jnp.float32)
    P["w2_oihw"] = 0.2 * jax.random.normal(ks[4], (planes, planes, 3, 3), jnp.float32)
    P["w3_oihw"] = 0.2 * jax.random.normal(ks[5], (c4, planes, 1, 1), jnp.float32)
    P["wsc_oihw"] = 0.2 * jax.random.normal(ks[6], (c4, in_planes, 1, 1), jnp.float32)
    P["w_fc1"] = 0.2 * jax.random.normal(ks[7], (c4 // reduction, c4), jnp.float32)
    P["w_fc2"] = 0.2 * jax.random.normal(ks[8], (c4, c4 // reduction), jnp.float32)
    P["w_att"] = 0.2 * jax.random.normal(ks[9], (c4, in_planes), jnp.float32)
    return P


def prepare_kernel_params(P):
    """Pad to lane-dense (multiple-of-128) channel dims, bf16 weights, matmul layout."""
    in_planes, planes, reduction = P["in_planes"], P["planes"], P["reduction"]
    c4 = 4 * planes
    cr = c4 // reduction
    cin_p = _round_up(in_planes, LANE)
    cp1 = _round_up(planes, LANE)
    cp4 = _round_up(c4, LANE)
    cr_p = _round_up(cr, LANE)

    def pad_mat(w, r, c):
        out = jnp.zeros((r, c), jnp.bfloat16)
        return out.at[:w.shape[0], :w.shape[1]].set(w.astype(jnp.bfloat16))

    def pad_bn(scale, shift, cpad):
        s = jnp.zeros((1, cpad), jnp.float32).at[0, :scale.shape[0]].set(scale)
        b = jnp.zeros((1, cpad), jnp.float32).at[0, :shift.shape[0]].set(shift)
        return s, b

    Q = {"planes": planes, "in_planes": in_planes,
         "Cin_p": cin_p, "Cp1": cp1, "Cp4": cp4, "Cr_p": cr_p}
    Q["s1"], Q["b1"] = pad_bn(P["bn1_scale"], P["bn1_shift"], cin_p)
    Q["s2"], Q["b2"] = pad_bn(P["bn2_scale"], P["bn2_shift"], cp1)
    Q["s3"], Q["b3"] = pad_bn(P["bn3_scale"], P["bn3_shift"], cp1)
    Q["w1"] = pad_mat(P["w1_oihw"][:, :, 0, 0].T, cin_p, cp1)
    Q["w3"] = pad_mat(P["w3_oihw"][:, :, 0, 0].T, cp1, cp4)
    Q["wsc"] = pad_mat(P["wsc_oihw"][:, :, 0, 0].T, cin_p, cp4)
    Q["wfc1"] = pad_mat(P["w_fc1"].T, cp4, cr_p)
    Q["wfc2"] = pad_mat(P["w_fc2"].T, cr_p, cp4)
    Q["watt"] = pad_mat(P["w_att"].T, cin_p, cp4)
    w2 = jnp.zeros((9, cp1, cp1), jnp.bfloat16)
    for kh in range(3):
        for kw in range(3):
            w2 = w2.at[kh * 3 + kw, :planes, :planes].set(
                P["w2_oihw"][:, :, kh, kw].T.astype(jnp.bfloat16))
    Q["w2"] = w2
    return Q


def preact_bottleneck_forward(x_nchw, att, Q, stride=1):
    """x_nchw: (B, in_planes, H, W); att: (B, in_planes). Returns (out, all_att)."""
    b, cin, h, w = x_nchw.shape
    planes = Q["planes"]
    c4 = 4 * planes
    cin_p, cp1, cp4 = Q["Cin_p"], Q["Cp1"], Q["Cp4"]

    # NHWC, channel-pad to lane width, bf16 MXU operands.
    x_nhwc = jnp.transpose(x_nchw, (0, 2, 3, 1)).astype(jnp.bfloat16)
    x_p = jnp.zeros((b, h, w, cin_p), jnp.bfloat16).at[..., :cin].set(x_nhwc)
    att_p = jnp.zeros((b, cin_p), jnp.bfloat16).at[:, :cin].set(att.astype(jnp.bfloat16))

    # K1: conv1 (fused BN1+ReLU prologue, BN2+ReLU epilogue).
    o1b = conv1_fused(x_p.reshape(b * h * w, cin_p),
                      Q["s1"], Q["b1"], Q["w1"], Q["s2"], Q["b2"])
    o1b = o1b.reshape(b, h, w, cp1)
    # Spatial zero padding for the 3x3 conv (applied AFTER BN2+ReLU, as in torch).
    o1b_pad = jnp.pad(o1b, ((0, 0), (1, 1), (1, 1), (0, 0)))

    # K2: 3x3 conv + BN3+ReLU + conv3 + pooled row sums.
    o3, sums, ho, wo = conv2_conv3_pool(o1b_pad, Q["w2"], Q["w3"],
                                        Q["s3"], Q["b3"], stride)
    s_out = ho * wo

    # K3: SE attention vector (divide pooled sums by the TRUE spatial size).
    all_att_p = se_attention(sums.reshape(b, cp4), att_p,
                             Q["wfc1"], Q["wfc2"], Q["watt"], 1.0 / float(s_out))

    # K4: fused strided-shortcut conv + sigmoid gate + residual add.
    # TODO(synk): identity-shortcut / no-att_fc configs (in_planes == 4*planes,
    # stride == 1) are not implemented; the spec's test config always has both.
    xs = x_p[:, ::stride, ::stride, :].reshape(b, s_out, cin_p)
    out_p = shortcut_gate_add(xs, Q["s1"], Q["b1"], Q["wsc"], all_att_p, o3)

    out = jnp.transpose(out_p[:, :, :c4].reshape(b, ho, wo, c4), (0, 3, 1, 2))
    return out, all_att_p[:, :c4]


# ----------------------------------------------------------------------------
# Pure-JAX reference (f32) for validation
# ----------------------------------------------------------------------------

def reference_forward(x, att, P, stride=1):
    def bn(z, scale, shift):
        return z * scale.reshape(1, -1, 1, 1) + shift.reshape(1, -1, 1, 1)

    def conv(z, wgt, s=1, pad=0):
        return jax.lax.conv_general_dilated(
            z, wgt, (s, s), [(pad, pad), (pad, pad)],
            dimension_numbers=("NCHW", "OIHW", "NCHW"))

    out = jax.nn.relu(bn(x, P["bn1_scale"], P["bn1_shift"]))
    shortcut = conv(out, P["wsc_oihw"], stride)
    o = conv(out, P["w1_oihw"])
    o = conv(jax.nn.relu(bn(o, P["bn2_scale"], P["bn2_shift"])), P["w2_oihw"], stride, 1)
    o = conv(jax.nn.relu(bn(o, P["bn3_scale"], P["bn3_shift"])), P["w3_oihw"])
    y = jnp.mean(o, axis=(2, 3))
    pre_att = att @ P["w_att"].T
    all_att = jax.nn.relu(y @ P["w_fc1"].T) @ P["w_fc2"].T + pre_att
    gate = jax.nn.sigmoid(all_att)[:, :, None, None]
    return o * gate + shortcut, all_att


if __name__ == "__main__":
    B, in_planes, planes, H, W = 2, 4, 4, 16, 16
    stride = 1

    key = jax.random.PRNGKey(0)
    k_x, k_att, k_p = jax.random.split(key, 3)
    x = jax.random.normal(k_x, (B, in_planes, H, W), jnp.float32)
    att = jax.random.normal(k_att, (B, in_planes), jnp.float32)

    P = make_params(k_p, in_planes, planes)
    Q = prepare_kernel_params(P)

    out, att_out = preact_bottleneck_forward(x, att, Q, stride=stride)
    out = jax.block_until_ready(out)
    att_out = jax.block_until_ready(att_out)

    ref_out, ref_att = reference_forward(x, att, P, stride=stride)
    assert out.shape == (B, 4 * planes, H, W)
    assert att_out.shape == (B, 4 * planes)
    # bf16 MXU operands vs f32 reference -> loose-but-meaningful tolerance.
    assert jnp.allclose(out, ref_out, atol=3e-2, rtol=3e-2)
    assert jnp.allclose(att_out, ref_att, atol=3e-2, rtol=3e-2)

    print("KERNEL_OK")
</pallas_src>

<mosaic_0001>
module attributes {stable_mosaic.version = 11 : i64} {
  func.func @_conv1_kernel(%arg0: i32, %arg1: memref<512x128xbf16, #tpu.memory_space<vmem>>, %arg2: memref<1x128xf32, #tpu.memory_space<vmem>>, %arg3: memref<1x128xf32, #tpu.memory_space<vmem>>, %arg4: memref<128x128xbf16, #tpu.memory_space<vmem>>, %arg5: memref<1x128xf32, #tpu.memory_space<vmem>>, %arg6: memref<1x128xf32, #tpu.memory_space<vmem>>, %arg7: memref<512x128xbf16, #tpu.memory_space<vmem>>) attributes {dimension_semantics = [#tpu.dimension_semantics<parallel>], iteration_bounds = array<i64: 1>, scalar_prefetch = 0 : i64, scratch_operands = 0 : i64, tpu.core_type = #tpu.core_type<tc>, window_params = [{transform_indices = @transform_0, window_bounds = array<i64: 512, 128>}, {pipeline_mode = #tpu.pipeline_mode<synchronous>, transform_indices = @transform_1, window_bounds = array<i64: 1, 128>}, {pipeline_mode = #tpu.pipeline_mode<synchronous>, transform_indices = @transform_2, window_bounds = array<i64: 1, 128>}, {pipeline_mode = #tpu.pipeline_mode<synchronous>, transform_indices = @transform_3, window_bounds = array<i64: 128, 128>}, {pipeline_mode = #tpu.pipeline_mode<synchronous>, transform_indices = @transform_4, window_bounds = array<i64: 1, 128>}, {pipeline_mode = #tpu.pipeline_mode<synchronous>, transform_indices = @transform_5, window_bounds = array<i64: 1, 128>}, {transform_indices = @transform_6, window_bounds = array<i64: 512, 128>}]} {
    %c0 = arith.constant 0 : index
    %c0_0 = arith.constant 0 : index
    %0 = vector.load %arg1[%c0, %c0_0] : memref<512x128xbf16, #tpu.memory_space<vmem>>, vector<512x128xbf16>
    %1 = arith.extf %0 : vector<512x128xbf16> to vector<512x128xf32>
    %c0_1 = arith.constant 0 : index
    %c0_2 = arith.constant 0 : index
    %2 = vector.load %arg2[%c0_1, %c0_2] : memref<1x128xf32, #tpu.memory_space<vmem>>, vector<1x128xf32>
    %3 = vector.broadcast %2 : vector<1x128xf32> to vector<512x128xf32>
    %4 = arith.mulf %1, %3 : vector<512x128xf32>
    %c0_3 = arith.constant 0 : index
    %c0_4 = arith.constant 0 : index
    %5 = vector.load %arg3[%c0_3, %c0_4] : memref<1x128xf32, #tpu.memory_space<vmem>>, vector<1x128xf32>
    %6 = vector.broadcast %5 : vector<1x128xf32> to vector<512x128xf32>
    %7 = arith.addf %4, %6 : vector<512x128xf32>
    %cst = arith.constant 0.000000e+00 : f32
    %8 = vector.broadcast %cst : f32 to vector<512x128xf32>
    %9 = arith.maximumf %7, %8 : vector<512x128xf32>
    %10 = arith.truncf %9 : vector<512x128xf32> to vector<512x128xbf16>
    %c0_5 = arith.constant 0 : index
    %c0_6 = arith.constant 0 : index
    %11 = vector.load %arg4[%c0_5, %c0_6] : memref<128x128xbf16, #tpu.memory_space<vmem>>, vector<128x128xbf16>
    %cst_7 = arith.constant dense<0.000000e+00> : vector<512x128xf32>
    %12 = tpu.matmul %10, %11, %cst_7 {dimension_numbers = #tpu.dot_dimension_numbers<[1], [0], [0], [1], [0, 0, 1, 1], [], []>} : vector<512x128xbf16>, vector<128x128xbf16>, vector<512x128xf32> -> vector<512x128xf32>
    %c0_8 = arith.constant 0 : index
    %c0_9 = arith.constant 0 : index
    %13 = vector.load %arg5[%c0_8, %c0_9] : memref<1x128xf32, #tpu.memory_space<vmem>>, vector<1x128xf32>
    %14 = vector.broadcast %13 : vector<1x128xf32> to vector<512x128xf32>
    %15 = arith.mulf %12, %14 : vector<512x128xf32>
    %c0_10 = arith.constant 0 : index
    %c0_11 = arith.constant 0 : index
    %16 = vector.load %arg6[%c0_10, %c0_11] : memref<1x128xf32, #tpu.memory_space<vmem>>, vector<1x128xf32>
    %17 = vector.broadcast %16 : vector<1x128xf32> to vector<512x128xf32>
    %18 = arith.addf %15, %17 : vector<512x128xf32>
    %cst_12 = arith.constant 0.000000e+00 : f32
    %19 = vector.broadcast %cst_12 : f32 to vector<512x128xf32>
    %20 = arith.maximumf %18, %19 : vector<512x128xf32>
    %21 = arith.truncf %20 : vector<512x128xf32> to vector<512x128xbf16>
    %c0_13 = arith.constant 0 : index
    %c0_14 = arith.constant 0 : index
    %22 = vector.load %arg7[%c0_13, %c0_14] : memref<512x128xbf16, #tpu.memory_space<vmem>>, vector<512x128xbf16>
    tpu.vector_store %arg7[%c0_13, %c0_14], %21 {strides = array<i32>} : memref<512x128xbf16, #tpu.memory_space<vmem>>, vector<512x128xbf16>,
    return
  }
  func.func @transform_0(%arg0: i32) -> (i32, i32) {
    %c0_i32 = arith.constant 0 : i32
    %c0_i32_0 = arith.constant 0 : i32
    return %arg0, %c0_i32 : i32, i32
  }
  func.func @transform_1(%arg0: i32) -> (i32, i32) {
    %c0_i32 = arith.constant 0 : i32
    %c0_i32_0 = arith.constant 0 : i32
    %c0_i32_1 = arith.constant 0 : i32
    return %c0_i32, %c0_i32_0 : i32, i32
  }
  func.func @transform_2(%arg0: i32) -> (i32, i32) {
    %c0_i32 = arith.constant 0 : i32
    %c0_i32_0 = arith.constant 0 : i32
    %c0_i32_1 = arith.constant 0 : i32
    return %c0_i32, %c0_i32_0 : i32, i32
  }
  func.func @transform_3(%arg0: i32) -> (i32, i32) {
    %c0_i32 = arith.constant 0 : i32
    %c0_i32_0 = arith.constant 0 : i32
    %c0_i32_1 = arith.constant 0 : i32
    return %c0_i32, %c0_i32_0 : i32, i32
  }
  func.func @transform_4(%arg0: i32) -> (i32, i32) {
    %c0_i32 = arith.constant 0 : i32
    %c0_i32_0 = arith.constant 0 : i32
    %c0_i32_1 = arith.constant 0 : i32
    return %c0_i32, %c0_i32_0 : i32, i32
  }
  func.func @transform_5(%arg0: i32) -> (i32, i32) {
    %c0_i32 = arith.constant 0 : i32
    %c0_i32_0 = arith.constant 0 : i32
    %c0_i32_1 = arith.constant 0 : i32
    return %c0_i32, %c0_i32_0 : i32, i32
  }
  func.func @transform_6(%arg0: i32) -> (i32, i32) {
    %c0_i32 = arith.constant 0 : i32
    %c0_i32_0 = arith.constant 0 : i32
    return %arg0, %c0_i32 : i32, i32
  }
}

</mosaic_0001>

<llo_original>
// kernel: tpu_custom_call.1
$region0: #{tpu_custom_call.1}
  #allocation0 [shape = 'u32[]', space=smem, size = 0x4, offset = 0x4, fixed_abs, tag = 'smem constant byte address 0x4 - core index']
  #allocation1 [shape = 'u32[144,128]{1,0:T(1,128)}', space=vmem, size = 0x12000, scoped, tag = 'internal scratch']
  %s0 = inlined_call_operand.hbm [shape: bf16[512,128], index: 0, kind: input, shape index: {}]
  %s1 = inlined_call_operand.vmem [shape: f32[1,128], index: 1, kind: input, shape index: {}]
  %s2 = inlined_call_operand.vmem [shape: f32[1,128], index: 2, kind: input, shape index: {}]
  %s3 = inlined_call_operand.hbm [shape: bf16[128,128], index: 3, kind: input, shape index: {}]
  %s4 = inlined_call_operand.vmem [shape: f32[1,128], index: 4, kind: input, shape index: {}]
  %s5 = inlined_call_operand.vmem [shape: f32[1,128], index: 5, kind: input, shape index: {}]
  %s6 = inlined_call_operand.hbm [shape: bf16[512,128], index: 6, kind: output, shape index: {}]
  %s7 = sld [smem:[#allocation0]]
  $region42: #{tpu_custom_call.1} parent=0
    _
  %s9 = ssub.s32 1, %s7
  %s10 = scalar_select 0, %s9, %s7
  $region1: #{tpu_custom_call.1} parent=0
    #allocation2 [shape = 'u8[131072]{0}', space=vmem, size = 0x20000, scoped, tag = 'input window, operand 0, single buffered']
    #allocation3 [shape = 's32[1]{0}', space=sflag, size = 0x4, scoped, tag = 'scoped memory for tpu_custom_call.1']
    #allocation4 [shape = 's32[1]{0}', space=sflag, size = 0x4, scoped, tag = 'scoped memory for tpu_custom_call.1']
    #allocation5 [shape = 'u8[32768]{0}', space=vmem, size = 0x8000, scoped, tag = 'input window, operand 3, single buffered']
    #allocation6 [shape = 's32[1]{0}', space=sflag, size = 0x4, scoped, tag = 'scoped memory for tpu_custom_call.1']
    #allocation7 [shape = 'u8[131072]{0}', space=vmem, size = 0x20000, scoped, tag = 'output window, operand 0, single buffered']
    %11 = vsyncpa [#allocation3], 0
    %12 = vsyncpa [#allocation6], 0
    %13 = vsyncpa [#allocation4], 0
    // Predicated region
    $region2: #{tpu_custom_call.1} parent=1 // pred_check
      _
    $region3: #{tpu_custom_call.1} parent=1 // pred_check_branch
      %15 = sbr.rel (0) target = $region5
    $region4: #{tpu_custom_call.1} parent=1 // pred_region
      %s17 = ssub.s32 4096, 4096
      %18 = vsyncadd [#allocation3], %s17
      %s19 = sshll.u32 [#allocation2], 4
      %s20 = int_to_ptr.vmem [resolvable:$true] %s19
      %25 = dma.hbm_to_vmem [thread:$0]  %s0, 4096, %s20, [#allocation3], 64, 64, 4
    $region5: #{tpu_custom_call.1} parent=1 // pred_fallthru
      _
    // Predicated region
    $region6: #{tpu_custom_call.1} parent=1 // pred_check
      _
    $region7: #{tpu_custom_call.1} parent=1 // pred_check_branch
      %27 = sbr.rel (0) target = $region9
    $region8: #{tpu_custom_call.1} parent=1 // pred_region
      _
    $region9: #{tpu_custom_call.1} parent=1 // pred_fallthru
      _
    // Predicated region
    $region10: #{tpu_custom_call.1} parent=1 // pred_check
      _
    $region11: #{tpu_custom_call.1} parent=1 // pred_check_branch
      %29 = sbr.rel (0) target = $region13
    $region12: #{tpu_custom_call.1} parent=1 // pred_region
      _
    $region13: #{tpu_custom_call.1} parent=1 // pred_fallthru
      _
    // Predicated region
    $region14: #{tpu_custom_call.1} parent=1 // pred_check
      _
    $region15: #{tpu_custom_call.1} parent=1 // pred_check_branch
      %31 = sbr.rel (0) target = $region17
    $region16: #{tpu_custom_call.1} parent=1 // pred_region
      %s33 = ssub.s32 1024, 1024
      %34 = vsyncadd [#allocation6], %s33
      %s35 = sshll.u32 [#allocation5], 4
      %s36 = int_to_ptr.vmem [resolvable:$true] %s35
      %41 = dma.hbm_to_vmem [thread:$0]  %s3, 1024, %s36, [#allocation6], 64, 64, 4
    $region17: #{tpu_custom_call.1} parent=1 // pred_fallthru
      _
    // Predicated region
    $region18: #{tpu_custom_call.1} parent=1 // pred_check
      _
    $region19: #{tpu_custom_call.1} parent=1 // pred_check_branch
      %43 = sbr.rel (0) target = $region21
    $region20: #{tpu_custom_call.1} parent=1 // pred_region
      _
    $region21: #{tpu_custom_call.1} parent=1 // pred_fallthru
      _
    // Predicated region
    $region22: #{tpu_custom_call.1} parent=1 // pred_check
      _
    $region23: #{tpu_custom_call.1} parent=1 // pred_check_branch
      %45 = sbr.rel (0) target = $region25
    $region24: #{tpu_custom_call.1} parent=1 // pred_region
      _
    $region25: #{tpu_custom_call.1} parent=1 // pred_fallthru
      _
    // Predicated region
    $region26: #{tpu_custom_call.1} parent=1 // pred_check
      _
    $region27: #{tpu_custom_call.1} parent=1 // pred_check_branch
      %47 = sbr.rel (0) target = $region29
    $region28: #{tpu_custom_call.1} parent=1 // pred_region
      %48 = dma.done [#allocation3], 4096
    $region29: #{tpu_custom_call.1} parent=1 // pred_fallthru
      _
    // Predicated region
    $region30: #{tpu_custom_call.1} parent=1 // pred_check
      _
    $region31: #{tpu_custom_call.1} parent=1 // pred_check_branch
      %50 = sbr.rel (0) target = $region33
    $region32: #{tpu_custom_call.1} parent=1 // pred_region
      %51 = dma.done [#allocation6], 1024
    $region33: #{tpu_custom_call.1} parent=1 // pred_fallthru
      _
    %v53 = vld [vmem:[#allocation2] sm:$0xf]
    %v54 = vld [vmem:[#allocation2 + $0x4] sm:$0xf]
    %v55 = vld [vmem:[#allocation2 + $0x8] sm:$0xf]
    %v56 = vld [vmem:[#allocation2 + $0xc] sm:$0xf]
    %v57 = vld [vmem:[#allocation2 + $0x10] sm:$0xf]
    %v58 = vld [vmem:[#allocation2 + $0x14] sm:$0xf]
    %v59 = vld [vmem:[#allocation2 + $0x18] sm:$0xf]
    %v60 = vld [vmem:[#allocation2 + $0x1c] sm:$0xf]
    %v61 = vld [vmem:[#allocation2 + $0x20] sm:$0xf]
    %v62 = vld [vmem:[#allocation2 + $0x24] sm:$0xf]
    %v63 = vld [vmem:[#allocation2 + $0x28] sm:$0xf]
    %v64 = vld [vmem:[#allocation2 + $0x2c] sm:$0xf]
    %v65 = vld [vmem:[#allocation2 + $0x30] sm:$0xf]
    %v66 = vld [vmem:[#allocation2 + $0x34] sm:$0xf]
    %v67 = vld [vmem:[#allocation2 + $0x38] sm:$0xf]
    %v68 = vld [vmem:[#allocation2 + $0x3c] sm:$0xf]
    %v69 = vld [vmem:[#allocation2 + $0x40] sm:$0xf]
    %v70 = vld [vmem:[#allocation2 + $0x44] sm:$0xf]
    %v71 = vld [vmem:[#allocation2 + $0x48] sm:$0xf]
    %v72 = vld [vmem:[#allocation2 + $0x4c] sm:$0xf]
    %v73 = vld [vmem:[#allocation2 + $0x50] sm:$0xf]
    %v74 = vld [vmem:[#allocation2 + $0x54] sm:$0xf]
    %v75 = vld [vmem:[#allocation2 + $0x58] sm:$0xf]
    %v76 = vld [vmem:[#allocation2 + $0x5c] sm:$0xf]
    %v77 = vld [vmem:[#allocation2 + $0x60] sm:$0xf]
    %v78 = vld [vmem:[#allocation2 + $0x64] sm:$0xf]
    %v79 = vld [vmem:[#allocation2 + $0x68] sm:$0xf]
    %v80 = vld [vmem:[#allocation2 + $0x6c] sm:$0xf]
    %v81 = vld [vmem:[#allocation2 + $0x70] sm:$0xf]
    %v82 = vld [vmem:[#allocation2 + $0x74] sm:$0xf]
    %v83 = vld [vmem:[#allocation2 + $0x78] sm:$0xf]
    %v84 = vld [vmem:[#allocation2 + $0x7c] sm:$0xf]
    %v85 = vld [vmem:[#allocation2 + $0x80] sm:$0xf]
    %v86 = vld [vmem:[#allocation2 + $0x84] sm:$0xf]
    %v87 = vld [vmem:[#allocation2 + $0x88] sm:$0xf]
    %v88 = vld [vmem:[#allocation2 + $0x8c] sm:$0xf]
    %v89 = vld [vmem:[#allocation2 + $0x90] sm:$0xf]
    %v90 = vld [vmem:[#allocation2 + $0x94] sm:$0xf]
    %v91 = vld [vmem:[#allocation2 + $0x98] sm:$0xf]
    %v92 = vld [vmem:[#allocation2 + $0x9c] sm:$0xf]
    %v93 = vld [vmem:[#allocation2 + $0xa0] sm:$0xf]
    %v94 = vld [vmem:[#allocation2 + $0xa4] sm:$0xf]
    %v95 = vld [vmem:[#allocation2 + $0xa8] sm:$0xf]
    %v96 = vld [vmem:[#allocation2 + $0xac] sm:$0xf]
    %v97 = vld [vmem:[#allocation2 + $0xb0] sm:$0xf]
    %v98 = vld [vmem:[#allocation2 + $0xb4] sm:$0xf]
    %v99 = vld [vmem:[#allocation2 + $0xb8] sm:$0xf]
    %v100 = vld [vmem:[#allocation2 + $0xbc] sm:$0xf]
    %v101 = vld [vmem:[#allocation2 + $0xc0] sm:$0xf]
    %v102 = vld [vmem:[#allocation2 + $0xc4] sm:$0xf]
    %v103 = vld [vmem:[#allocation2 + $0xc8] sm:$0xf]
    %v104 = vld [vmem:[#allocation2 + $0xcc] sm:$0xf]
    %v105 = vld [vmem:[#allocation2 + $0xd0] sm:$0xf]
    %v106 = vld [vmem:[#allocation2 + $0xd4] sm:$0xf]
    %v107 = vld [vmem:[#allocation2 + $0xd8] sm:$0xf]
    %v108 = vld [vmem:[#allocation2 + $0xdc] sm:$0xf]
    %v109 = vld [vmem:[#allocation2 + $0xe0] sm:$0xf]
    %v110 = vld [vmem:[#allocation2 + $0xe4] sm:$0xf]
    %v111 = vld [vmem:[#allocation2 + $0xe8] sm:$0xf]
    %v112 = vld [vmem:[#allocation2 + $0xec] sm:$0xf]
    %v113 = vld [vmem:[#allocation2 + $0xf0] sm:$0xf]
    %v114 = vld [vmem:[#allocation2 + $0xf4] sm:$0xf]
    %v115 = vld [vmem:[#allocation2 + $0xf8] sm:$0xf]
    %v116 = vld [vmem:[#allocation2 + $0xfc] sm:$0xf]
    %v117 = vunpack.c.l.bf16 %v53
    %v118 = vunpack.c.l.bf16 %v54
    %v119 = vunpack.c.l.bf16 %v55
    %v120 = vunpack.c.l.bf16 %v56
    %v121 = vunpack.c.l.bf16 %v57
    %v122 = vunpack.c.l.bf16 %v58
    %v123 = vunpack.c.l.bf16 %v59
    %v124 = vunpack.c.l.bf16 %v60
    %v125 = vunpack.c.l.bf16 %v61
    %v126 = vunpack.c.l.bf16 %v62
    %v127 = vunpack.c.l.bf16 %v63
    %v128 = vunpack.c.l.bf16 %v64
    %v129 = vunpack.c.l.bf16 %v65
    %v130 = vunpack.c.l.bf16 %v66
    %v131 = vunpack.c.l.bf16 %v67
    %v132 = vunpack.c.l.bf16 %v68
    %v133 = vunpack.c.l.bf16 %v69
    %v134 = vunpack.c.l.bf16 %v70
    %v135 = vunpack.c.l.bf16 %v71
    %v136 = vunpack.c.l.bf16 %v72
    %v137 = vunpack.c.l.bf16 %v73
    %v138 = vunpack.c.l.bf16 %v74
    %v139 = vunpack.c.l.bf16 %v75
    %v140 = vunpack.c.l.bf16 %v76
    %v141 = vunpack.c.l.bf16 %v77
    %v142 = vunpack.c.l.bf16 %v78
    %v143 = vunpack.c.l.bf16 %v79
    %v144 = vunpack.c.l.bf16 %v80
    %v145 = vunpack.c.l.bf16 %v81
    %v146 = vunpack.c.l.bf16 %v82
    %v147 = vunpack.c.l.bf16 %v83
    %v148 = vunpack.c.l.bf16 %v84
    %v149 = vunpack.c.l.bf16 %v85
    %v150 = vunpack.c.l.bf16 %v86
    %v151 = vunpack.c.l.bf16 %v87
    %v152 = vunpack.c.l.bf16 %v88
    %v153 = vunpack.c.l.bf16 %v89
    %v154 = vunpack.c.l.bf16 %v90
    %v155 = vunpack.c.l.bf16 %v91
    %v156 = vunpack.c.l.bf16 %v92
    %v157 = vunpack.c.l.bf16 %v93
    %v158 = vunpack.c.l.bf16 %v94
    %v159 = vunpack.c.l.bf16 %v95
    %v160 = vunpack.c.l.bf16 %v96
    %v161 = vunpack.c.l.bf16 %v97
    %v162 = vunpack.c.l.bf16 %v98
    %v163 = vunpack.c.l.bf16 %v99
    %v164 = vunpack.c.l.bf16 %v100
    %v165 = vunpack.c.l.bf16 %v101
    %v166 = vunpack.c.l.bf16 %v102
    %v167 = vunpack.c.l.bf16 %v103
    %v168 = vunpack.c.l.bf16 %v104
    %v169 = vunpack.c.l.bf16 %v105
    %v170 = vunpack.c.l.bf16 %v106
    %v171 = vunpack.c.l.bf16 %v107
    %v172 = vunpack.c.l.bf16 %v108
    %v173 = vunpack.c.l.bf16 %v109
    %v174 = vunpack.c.l.bf16 %v110
    %v175 = vunpack.c.l.bf16 %v111
    %v176 = vunpack.c.l.bf16 %v112
    %v177 = vunpack.c.l.bf16 %v113
    %v178 = vunpack.c.l.bf16 %v114
    %v179 = vunpack.c.l.bf16 %v115
    %v180 = vunpack.c.l.bf16 %v116
    %v181 = vld [vmem:[%s1] sm:$0x1]
    %v183 = vlaneseq
    %v184 = vshrl.u32 %v183, 7
    %v185 = vsub.s32 0, %v184
    %v186 = vrot.slane %v181, %v185
    %v188 = vmul.f32 %v117, %v186
    %v189 = vmul.f32 %v118, %v186
    %v190 = vmul.f32 %v119, %v186
    %v191 = vmul.f32 %v120, %v186
    %v192 = vmul.f32 %v121, %v186
    %v193 = vmul.f32 %v122, %v186
    %v194 = vmul.f32 %v123, %v186
    %v195 = vmul.f32 %v124, %v186
    %v196 = vmul.f32 %v125, %v186
    %v197 = vmul.f32 %v126, %v186
    %v198 = vmul.f32 %v127, %v186
    %v199 = vmul.f32 %v128, %v186
    %v200 = vmul.f32 %v129, %v186
    %v201 = vmul.f32 %v130, %v186
    %v202 = vmul.f32 %v131, %v186
    %v203 = vmul.f32 %v132, %v186
    %v204 = vmul.f32 %v133, %v186
    %v205 = vmul.f32 %v134, %v186
    %v206 = vmul.f32 %v135, %v186
    %v207 = vmul.f32 %v136, %v186
    %v208 = vmul.f32 %v137, %v186
    %v209 = vmul.f32 %v138, %v186
    %v210 = vmul.f32 %v139, %v186
    %v211 = vmul.f32 %v140, %v186
    %v212 = vmul.f32 %v141, %v186
    %v213 = vmul.f32 %v142, %v186
    %v214 = vmul.f32 %v143, %v186
    %v215 = vmul.f32 %v144, %v186
    %v216 = vmul.f32 %v145, %v186
    %v217 = vmul.f32 %v146, %v186
    %v218 = vmul.f32 %v147, %v186
    %v219 = vmul.f32 %v148, %v186
    %v220 = vmul.f32 %v149, %v186
    %v221 = vmul.f32 %v150, %v186
    %v222 = vmul.f32 %v151, %v186
    %v223 = vmul.f32 %v152, %v186
    %v224 = vmul.f32 %v153, %v186
    %v225 = vmul.f32 %v154, %v186
    %v226 = vmul.f32 %v155, %v186
    %v227 = vmul.f32 %v156, %v186
    %v228 = vmul.f32 %v157, %v186
    %v229 = vmul.f32 %v158, %v186
    %v230 = vmul.f32 %v159, %v186
    %v231 = vmul.f32 %v160, %v186
    %v232 = vmul.f32 %v161, %v186
    %v233 = vmul.f32 %v162, %v186
    %v234 = vmul.f32 %v163, %v186
    %v235 = vmul.f32 %v164, %v186
    %v236 = vmul.f32 %v165, %v186
    %v237 = vmul.f32 %v166, %v186
    %v238 = vmul.f32 %v167, %v186
    %v239 = vmul.f32 %v168, %v186
    %v240 = vmul.f32 %v169, %v186
    %v241 = vmul.f32 %v170, %v186
    %v242 = vmul.f32 %v171, %v186
    %v243 = vmul.f32 %v172, %v186
    %v244 = vmul.f32 %v173, %v186
    %v245 = vmul.f32 %v174, %v186
    %v246 = vmul.f32 %v175, %v186
    %v247 = vmul.f32 %v176, %v186
    %v248 = vmul.f32 %v177, %v186
    %v249 = vmul.f32 %v178, %v186
    %v250 = vmul.f32 %v179, %v186
    %v251 = vmul.f32 %v180, %v186
    %v252 = vld [vmem:[%s2] sm:$0x1]
    %v254 = vlaneseq
    %v255 = vshrl.u32 %v254, 7
    %v256 = vsub.s32 0, %v255
    %v257 = vrot.slane %v252, %v256
    %v259 = vadd.f32 %v188, %v257
    %v260 = vadd.f32 %v189, %v257
    %v261 = vadd.f32 %v190, %v257
    %v262 = vadd.f32 %v191, %v257
    %v263 = vadd.f32 %v192, %v257
    %v264 = vadd.f32 %v193, %v257
    %v265 = vadd.f32 %v194, %v257
    %v266 = vadd.f32 %v195, %v257
    %v267 = vadd.f32 %v196, %v257
    %v268 = vadd.f32 %v197, %v257
    %v269 = vadd.f32 %v198, %v257
    %v270 = vadd.f32 %v199, %v257
    %v271 = vadd.f32 %v200, %v257
    %v272 = vadd.f32 %v201, %v257
    %v273 = vadd.f32 %v202, %v257
    %v274 = vadd.f32 %v203, %v257
    %v275 = vadd.f32 %v204, %v257
    %v276 = vadd.f32 %v205, %v257
    %v277 = vadd.f32 %v206, %v257
    %v278 = vadd.f32 %v207, %v257
    %v279 = vadd.f32 %v208, %v257
    %v280 = vadd.f32 %v209, %v257
    %v281 = vadd.f32 %v210, %v257
    %v282 = vadd.f32 %v211, %v257
    %v283 = vadd.f32 %v212, %v257
    %v284 = vadd.f32 %v213, %v257
    %v285 = vadd.f32 %v214, %v257
    %v286 = vadd.f32 %v215, %v257
    %v287 = vadd.f32 %v216, %v257
    %v288 = vadd.f32 %v217, %v257
    %v289 = vadd.f32 %v218, %v257
    %v290 = vadd.f32 %v219, %v257
    %v291 = vadd.f32 %v220, %v257
    %v292 = vadd.f32 %v221, %v257
    %v293 = vadd.f32 %v222, %v257
    %v294 = vadd.f32 %v223, %v257
    %v295 = vadd.f32 %v224, %v257
    %v296 = vadd.f32 %v225, %v257
    %v297 = vadd.f32 %v226, %v257
    %v298 = vadd.f32 %v227, %v257
    %v299 = vadd.f32 %v228, %v257
    %v300 = vadd.f32 %v229, %v257
    %v301 = vadd.f32 %v230, %v257
    %v302 = vadd.f32 %v231, %v257
    %v303 = vadd.f32 %v232, %v257
    %v304 = vadd.f32 %v233, %v257
    %v305 = vadd.f32 %v234, %v257
    %v306 = vadd.f32 %v235, %v257
    %v307 = vadd.f32 %v236, %v257
    %v308 = vadd.f32 %v237, %v257
    %v309 = vadd.f32 %v238, %v257
    %v310 = vadd.f32 %v239, %v257
    %v311 = vadd.f32 %v240, %v257
    %v312 = vadd.f32 %v241, %v257
    %v313 = vadd.f32 %v242, %v257
    %v314 = vadd.f32 %v243, %v257
    %v315 = vadd.f32 %v244, %v257
    %v316 = vadd.f32 %v245, %v257
    %v317 = vadd.f32 %v246, %v257
    %v318 = vadd.f32 %v247, %v257
    %v319 = vadd.f32 %v248, %v257
    %v320 = vadd.f32 %v249, %v257
    %v321 = vadd.f32 %v250, %v257
    %v322 = vadd.f32 %v251, %v257
    %v323 = vmax.f32 %v259, 0.0
    %v324 = vmax.f32 %v260, 0.0
    %v325 = vmax.f32 %v261, 0.0
    %v326 = vmax.f32 %v262, 0.0
    %v327 = vmax.f32 %v263, 0.0
    %v328 = vmax.f32 %v264, 0.0
    %v329 = vmax.f32 %v265, 0.0
    %v330 = vmax.f32 %v266, 0.0
    %v331 = vmax.f32 %v267, 0.0
    %v332 = vmax.f32 %v268, 0.0
    %v333 = vmax.f32 %v269, 0.0
    %v334 = vmax.f32 %v270, 0.0
    %v335 = vmax.f32 %v271, 0.0
    %v336 = vmax.f32 %v272, 0.0
    %v337 = vmax.f32 %v273, 0.0
    %v338 = vmax.f32 %v274, 0.0
    %v339 = vmax.f32 %v275, 0.0
    %v340 = vmax.f32 %v276, 0.0
    %v341 = vmax.f32 %v277, 0.0
    %v342 = vmax.f32 %v278, 0.0
    %v343 = vmax.f32 %v279, 0.0
    %v344 = vmax.f32 %v280, 0.0
    %v345 = vmax.f32 %v281, 0.0
    %v346 = vmax.f32 %v282, 0.0
    %v347 = vmax.f32 %v283, 0.0
    %v348 = vmax.f32 %v284, 0.0
    %v349 = vmax.f32 %v285, 0.0
    %v350 = vmax.f32 %v286, 0.0
    %v351 = vmax.f32 %v287, 0.0
    %v352 = vmax.f32 %v288, 0.0
    %v353 = vmax.f32 %v289, 0.0
    %v354 = vmax.f32 %v290, 0.0
    %v355 = vmax.f32 %v291, 0.0
    %v356 = vmax.f32 %v292, 0.0
    %v357 = vmax.f32 %v293, 0.0
    %v358 = vmax.f32 %v294, 0.0
    %v359 = vmax.f32 %v295, 0.0
    %v360 = vmax.f32 %v296, 0.0
    %v361 = vmax.f32 %v297, 0.0
    %v362 = vmax.f32 %v298, 0.0
    %v363 = vmax.f32 %v299, 0.0
    %v364 = vmax.f32 %v300, 0.0
    %v365 = vmax.f32 %v301, 0.0
    %v366 = vmax.f32 %v302, 0.0
    %v367 = vmax.f32 %v303, 0.0
    %v368 = vmax.f32 %v304, 0.0
    %v369 = vmax.f32 %v305, 0.0
    %v370 = vmax.f32 %v306, 0.0
    %v371 = vmax.f32 %v307, 0.0
    %v372 = vmax.f32 %v308, 0.0
    %v373 = vmax.f32 %v309, 0.0
    %v374 = vmax.f32 %v310, 0.0
    %v375 = vmax.f32 %v311, 0.0
    %v376 = vmax.f32 %v312, 0.0
    %v377 = vmax.f32 %v313, 0.0
    %v378 = vmax.f32 %v314, 0.0
    %v379 = vmax.f32 %v315, 0.0
    %v380 = vmax.f32 %v316, 0.0
    %v381 = vmax.f32 %v317, 0.0
    %v382 = vmax.f32 %v318, 0.0
    %v383 = vmax.f32 %v319, 0.0
    %v384 = vmax.f32 %v320, 0.0
    %v385 = vmax.f32 %v321, 0.0
    %v386 = vmax.f32 %v322, 0.0
    %v387 = vpack.c.bf16 %v324, %v323
    %v388 = vpack.c.bf16 %v326, %v325
    %v389 = vpack.c.bf16 %v328, %v327
    %v390 = vpack.c.bf16 %v330, %v329
    %v391 = vpack.c.bf16 %v332, %v331
    %v392 = vpack.c.bf16 %v334, %v333
    %v393 = vpack.c.bf16 %v336, %v335
    %v394 = vpack.c.bf16 %v338, %v337
    %v395 = vpack.c.bf16 %v340, %v339
    %v396 = vpack.c.bf16 %v342, %v341
    %v397 = vpack.c.bf16 %v344, %v343
    %v398 = vpack.c.bf16 %v346, %v345
    %v399 = vpack.c.bf16 %v348, %v347
    %v400 = vpack.c.bf16 %v350, %v349
    %v401 = vpack.c.bf16 %v352, %v351
    %v402 = vpack.c.bf16 %v354, %v353
    %v403 = vpack.c.bf16 %v356, %v355
    %v404 = vpack.c.bf16 %v358, %v357
    %v405 = vpack.c.bf16 %v360, %v359
    %v406 = vpack.c.bf16 %v362, %v361
    %v407 = vpack.c.bf16 %v364, %v363
    %v408 = vpack.c.bf16 %v366, %v365
    %v409 = vpack.c.bf16 %v368, %v367
    %v410 = vpack.c.bf16 %v370, %v369
    %v411 = vpack.c.bf16 %v372, %v371
    %v412 = vpack.c.bf16 %v374, %v373
    %v413 = vpack.c.bf16 %v376, %v375
    %v414 = vpack.c.bf16 %v378, %v377
    %v415 = vpack.c.bf16 %v380, %v379
    %v416 = vpack.c.bf16 %v382, %v381
    %v417 = vpack.c.bf16 %v384, %v383
    %v418 = vpack.c.bf16 %v386, %v385
    %v419 = vld [vmem:[#allocation5] sm:$0xf]
    %v420 = vld [vmem:[#allocation5 + $0x4] sm:$0xf]
    %v421 = vld [vmem:[#allocation5 + $0x8] sm:$0xf]
    %v422 = vld [vmem:[#allocation5 + $0xc] sm:$0xf]
    %v423 = vld [vmem:[#allocation5 + $0x10] sm:$0xf]
    %v424 = vld [vmem:[#allocation5 + $0x14] sm:$0xf]
    %v425 = vld [vmem:[#allocation5 + $0x18] sm:$0xf]
    %v426 = vld [vmem:[#allocation5 + $0x1c] sm:$0xf]
    %v427 = vld [vmem:[#allocation5 + $0x20] sm:$0xf]
    %v428 = vld [vmem:[#allocation5 + $0x24] sm:$0xf]
    %v429 = vld [vmem:[#allocation5 + $0x28] sm:$0xf]
    %v430 = vld [vmem:[#allocation5 + $0x2c] sm:$0xf]
    %v431 = vld [vmem:[#allocation5 + $0x30] sm:$0xf]
    %v432 = vld [vmem:[#allocation5 + $0x34] sm:$0xf]
    %v433 = vld [vmem:[#allocation5 + $0x38] sm:$0xf]
    %v434 = vld [vmem:[#allocation5 + $0x3c] sm:$0xf]
    %v451 = vunpack.c.l.b16 %v419
    %v452 = vunpack.c.l.b16 %v420
    %v453 = vunpack.c.l.b16 %v421
    %v454 = vunpack.c.l.b16 %v422
    %v455 = vunpack.c.l.b16 %v423
    %v456 = vunpack.c.l.b16 %v424
    %v457 = vunpack.c.l.b16 %v425
    %v458 = vunpack.c.l.b16 %v426
    %v459 = vunpack.c.l.b16 %v427
    %v460 = vunpack.c.l.b16 %v428
    %v461 = vunpack.c.l.b16 %v429
    %v462 = vunpack.c.l.b16 %v430
    %v463 = vunpack.c.l.b16 %v431
    %v464 = vunpack.c.l.b16 %v432
    %v465 = vunpack.c.l.b16 %v433
    %v466 = vunpack.c.l.b16 %v434
    %v467 = vpack.c.b16 %v452, %v451
    %v468 = vpack.c.b16 %v454, %v453
    %v469 = vpack.c.b16 %v456, %v455
    %v470 = vpack.c.b16 %v458, %v457
    %v471 = vpack.c.b16 %v460, %v459
    %v472 = vpack.c.b16 %v462, %v461
    %v473 = vpack.c.b16 %v464, %v463
    %v474 = vpack.c.b16 %v466, %v465
    %483 = vmatprep.subr.bf16.mxu0 0
    %484 = vmatpush1.bf16.msra.mxu0 %v467
    %485 = vmatprep.subr.bf16.mxu0 0
    %486 = vmatpush1.bf16.msra.mxu0 %v468
    %487 = vmatprep.subr.bf16.mxu0 0
    %488 = vmatpush1.bf16.msra.mxu0 %v469
    %489 = vmatprep.subr.bf16.mxu0 0
    %490 = vmatpush1.bf16.msra.mxu0 %v470
    %491 = vmatprep.subr.bf16.mxu0 0
    %492 = vmatpush1.bf16.msra.mxu0 %v471
    %493 = vmatprep.subr.bf16.mxu0 0
    %494 = vmatpush1.bf16.msra.mxu0 %v472
    %495 = vmatprep.subr.bf16.mxu0 0
    %496 = vmatpush1.bf16.msra.mxu0 %v473
    %497 = vmatprep.subr.bf16.mxu0 0
    %498 = vmatpush1.bf16.msra.mxu0 %v474
    %499 = vmatprep.subr.bf16.mxu0 0
    %500 = vmatpush1.bf16.msra.mxu0 0
    %501 = vmatprep.subr.bf16.mxu0 0
    %502 = vmatpush1.bf16.msra.mxu0 0
    %503 = vmatprep.subr.bf16.mxu0 0
    %504 = vmatpush1.bf16.msra.mxu0 0
    %505 = vmatprep.subr.bf16.mxu0 0
    %506 = vmatpush1.bf16.msra.mxu0 0
    %507 = vmatprep.subr.bf16.mxu0 0
    %508 = vmatpush1.bf16.msra.mxu0 0
    %509 = vmatprep.subr.bf16.mxu0 0
    %510 = vmatpush1.bf16.msra.mxu0 0
    %511 = vmatprep.subr.bf16.mxu0 0
    %512 = vmatpush1.bf16.msra.mxu0 0
    %513 = vmatprep.subr.bf16.mxu0 0
    %514 = vmatpush1.bf16.msra.mxu0 0
    %515 = vmatprep.mubr.bf16.mxu0 0
    %516 = vmatmul.mubr.bf16.gmra.mrb[0].mxu0 %v387
    %v517 = vpop.f32.mrb[0].mxu0
    %v518 = vadd.f32 0.0, %v517
    %v519 = vpop.f32.mrb[0].mxu0
    %v520 = vpop.f32.mrb[0].mxu0
    %v521 = vadd.f32 0.0, %v520
    %v522 = vpop.f32.mrb[0].mxu0
    %523 = vmatprep.mubr.bf16.mxu0 0
    %524 = vmatmul.mubr.bf16.gmra.mrb[0].mxu0 %v388
    %v525 = vpop.f32.mrb[0].mxu0
    %v526 = vadd.f32 0.0, %v525
    %v527 = vpop.f32.mrb[0].mxu0
    %v528 = vpop.f32.mrb[0].mxu0
    %v529 = vadd.f32 0.0, %v528
    %v530 = vpop.f32.mrb[0].mxu0
    %531 = vmatprep.mubr.bf16.mxu0 0
    %532 = vmatmul.mubr.bf16.gmra.mrb[0].mxu0 %v389
    %v533 = vpop.f32.mrb[0].mxu0
    %v534 = vadd.f32 0.0, %v533
    %v535 = vpop.f32.mrb[0].mxu0
    %v536 = vpop.f32.mrb[0].mxu0
    %v537 = vadd.f32 0.0, %v536
    %v538 = vpop.f32.mrb[0].mxu0
    %539 = vmatprep.mubr.bf16.mxu0 0
    %540 = vmatmul.mubr.bf16.gmra.mrb[0].mxu0 %v390
    %v541 = vpop.f32.mrb[0].mxu0
    %v542 = vadd.f32 0.0, %v541
    %v543 = vpop.f32.mrb[0].mxu0
    %v544 = vpop.f32.mrb[0].mxu0
    %v545 = vadd.f32 0.0, %v544
    %v546 = vpop.f32.mrb[0].mxu0
    %547 = vmatprep.mubr.bf16.mxu0 0
    %548 = vmatmul.mubr.bf16.gmra.mrb[0].mxu0 %v391
    %v549 = vpop.f32.mrb[0].mxu0
    %v550 = vadd.f32 0.0, %v549
    %v551 = vpop.f32.mrb[0].mxu0
    %v552 = vpop.f32.mrb[0].mxu0
    %v553 = vadd.f32 0.0, %v552
    %v554 = vpop.f32.mrb[0].mxu0
    %555 = vmatprep.mubr.bf16.mxu0 0
    %556 = vmatmul.mubr.bf16.gmra.mrb[0].mxu0 %v392
    %v557 = vpop.f32.mrb[0].mxu0
    %v558 = vadd.f32 0.0, %v557
    %v559 = vpop.f32.mrb[0].mxu0
    %v560 = vpop.f32.mrb[0].mxu0
    %v561 = vadd.f32 0.0, %v560
    %v562 = vpop.f32.mrb[0].mxu0
    %563 = vmatprep.mubr.bf16.mxu0 0
    %564 = vmatmul.mubr.bf16.gmra.mrb[0].mxu0 %v393
    %v565 = vpop.f32.mrb[0].mxu0
    %v566 = vadd.f32 0.0, %v565
    %v567 = vpop.f32.mrb[0].mxu0
    %v568 = vpop.f32.mrb[0].mxu0
    %v569 = vadd.f32 0.0, %v568
    %v570 = vpop.f32.mrb[0].mxu0
    %571 = vmatprep.mubr.bf16.mxu0 0
    %572 = vmatmul.mubr.bf16.gmra.mrb[0].mxu0 %v394
    %v573 = vpop.f32.mrb[0].mxu0
    %v574 = vadd.f32 0.0, %v573
    %v575 = vpop.f32.mrb[0].mxu0
    %v576 = vpop.f32.mrb[0].mxu0
    %v577 = vadd.f32 0.0, %v576
    %v578 = vpop.f32.mrb[0].mxu0
    %579 = vmatprep.mubr.bf16.mxu0 0
    %580 = vmatmul.mubr.bf16.gmra.mrb[0].mxu0 %v395
    %v581 = vpop.f32.mrb[0].mxu0
    %v582 = vadd.f32 0.0, %v581
    %v583 = vpop.f32.mrb[0].mxu0
    %v584 = vpop.f32.mrb[0].mxu0
    %v585 = vadd.f32 0.0, %v584
    %v586 = vpop.f32.mrb[0].mxu0
    %587 = vmatprep.mubr.bf16.mxu0 0
    %588 = vmatmul.mubr.bf16.gmra.mrb[0].mxu0 %v396
    %v589 = vpop.f32.mrb[0].mxu0
    %v590 = vadd.f32 0.0, %v589
    %v591 = vpop.f32.mrb[0].mxu0
    %v592 = vpop.f32.mrb[0].mxu0
    %v593 = vadd.f32 0.0, %v592
    %v594 = vpop.f32.mrb[0].mxu0
    %595 = vmatprep.mubr.bf16.mxu0 0
    %596 = vmatmul.mubr.bf16.gmra.mrb[0].mxu0 %v397
    %v597 = vpop.f32.mrb[0].mxu0
    %v598 = vadd.f32 0.0, %v597
    %v599 = vpop.f32.mrb[0].mxu0
    %v600 = vpop.f32.mrb[0].mxu0
    %v601 = vadd.f32 0.0, %v600
    %v602 = vpop.f32.mrb[0].mxu0
    %603 = vmatprep.mubr.bf16.mxu0 0
    %604 = vmatmul.mubr.bf16.gmra.mrb[0].mxu0 %v398
    %v605 = vpop.f32.mrb[0].mxu0
    %v606 = vadd.f32 0.0, %v605
    %v607 = vpop.f32.mrb[0].mxu0
    %v608 = vpop.f32.mrb[0].mxu0
    %v609 = vadd.f32 0.0, %v608
    %v610 = vpop.f32.mrb[0].mxu0
    %611 = vmatprep.mubr.bf16.mxu0 0
    %612 = vmatmul.mubr.bf16.gmra.mrb[0].mxu0 %v399
    %v613 = vpop.f32.mrb[0].mxu0
    %v614 = vadd.f32 0.0, %v613
    %v615 = vpop.f32.mrb[0].mxu0
    %v616 = vpop.f32.mrb[0].mxu0
    %v617 = vadd.f32 0.0, %v616
    %v618 = vpop.f32.mrb[0].mxu0
    %619 = vmatprep.mubr.bf16.mxu0 0
    %620 = vmatmul.mubr.bf16.gmra.mrb[0].mxu0 %v400
    %v621 = vpop.f32.mrb[0].mxu0
    %v622 = vadd.f32 0.0, %v621
    %v623 = vpop.f32.mrb[0].mxu0
    %v624 = vpop.f32.mrb[0].mxu0
    %v625 = vadd.f32 0.0, %v624
    %v626 = vpop.f32.mrb[0].mxu0
    %627 = vmatprep.mubr.bf16.mxu0 0
    %628 = vmatmul.mubr.bf16.gmra.mrb[0].mxu0 %v401
    %v629 = vpop.f32.mrb[0].mxu0
    %v630 = vadd.f32 0.0, %v629
    %v631 = vpop.f32.mrb[0].mxu0
    %v632 = vpop.f32.mrb[0].mxu0
    %v633 = vadd.f32 0.0, %v632
    %v634 = vpop.f32.mrb[0].mxu0
    %635 = vmatprep.mubr.bf16.mxu0 0
    %636 = vmatmul.mubr.bf16.gmra.mrb[0].mxu0 %v402
    %v637 = vpop.f32.mrb[0].mxu0
    %v638 = vadd.f32 0.0, %v637
    %v639 = vpop.f32.mrb[0].mxu0
    %v640 = vpop.f32.mrb[0].mxu0
    %v641 = vadd.f32 0.0, %v640
    %v642 = vpop.f32.mrb[0].mxu0
    %643 = vmatprep.mubr.bf16.mxu0 0
    %644 = vmatmul.mubr.bf16.gmra.mrb[0].mxu0 %v403
    %v645 = vpop.f32.mrb[0].mxu0
    %v646 = vadd.f32 0.0, %v645
    %v647 = vpop.f32.mrb[0].mxu0
    %v648 = vpop.f32.mrb[0].mxu0
    %v649 = vadd.f32 0.0, %v648
    %v650 = vpop.f32.mrb[0].mxu0
    %651 = vmatprep.mubr.bf16.mxu0 0
    %652 = vmatmul.mubr.bf16.gmra.mrb[0].mxu0 %v404
    %v653 = vpop.f32.mrb[0].mxu0
    %v654 = vadd.f32 0.0, %v653
    %v655 = vpop.f32.mrb[0].mxu0
    %v656 = vpop.f32.mrb[0].mxu0
    %v657 = vadd.f32 0.0, %v656
    %v658 = vpop.f32.mrb[0].mxu0
    %659 = vmatprep.mubr.bf16.mxu0 0
    %660 = vmatmul.mubr.bf16.gmra.mrb[0].mxu0 %v405
    %v661 = vpop.f32.mrb[0].mxu0
    %v662 = vadd.f32 0.0, %v661
    %v663 = vpop.f32.mrb[0].mxu0
    %v664 = vpop.f32.mrb[0].mxu0
    %v665 = vadd.f32 0.0, %v664
    %v666 = vpop.f32.mrb[0].mxu0
    %667 = vmatprep.mubr.bf16.mxu0 0
    %668 = vmatmul.mubr.bf16.gmra.mrb[0].mxu0 %v406
    %v669 = vpop.f32.mrb[0].mxu0
    %v670 = vadd.f32 0.0, %v669
    %v671 = vpop.f32.mrb[0].mxu0
    %v672 = vpop.f32.mrb[0].mxu0
    %v673 = vadd.f32 0.0, %v672
    %v674 = vpop.f32.mrb[0].mxu0
    %675 = vmatprep.mubr.bf16.mxu0 0
    %676 = vmatmul.mubr.bf16.gmra.mrb[0].mxu0 %v407
    %v677 = vpop.f32.mrb[0].mxu0
    %v678 = vadd.f32 0.0, %v677
    %v679 = vpop.f32.mrb[0].mxu0
    %v680 = vpop.f32.mrb[0].mxu0
    %v681 = vadd.f32 0.0, %v680
    %v682 = vpop.f32.mrb[0].mxu0
    %683 = vmatprep.mubr.bf16.mxu0 0
    %684 = vmatmul.mubr.bf16.gmra.mrb[0].mxu0 %v408
    %v685 = vpop.f32.mrb[0].mxu0
    %v686 = vadd.f32 0.0, %v685
    %v687 = vpop.f32.mrb[0].mxu0
    %v688 = vpop.f32.mrb[0].mxu0
    %v689 = vadd.f32 0.0, %v688
    %v690 = vpop.f32.mrb[0].mxu0
    %691 = vmatprep.mubr.bf16.mxu0 0
    %692 = vmatmul.mubr.bf16.gmra.mrb[0].mxu0 %v409
    %v693 = vpop.f32.mrb[0].mxu0
    %v694 = vadd.f32 0.0, %v693
    %v695 = vpop.f32.mrb[0].mxu0
    %v696 = vpop.f32.mrb[0].mxu0
    %v697 = vadd.f32 0.0, %v696
    %v698 = vpop.f32.mrb[0].mxu0
    %699 = vmatprep.mubr.bf16.mxu0 0
    %700 = vmatmul.mubr.bf16.gmra.mrb[0].mxu0 %v410
    %v701 = vpop.f32.mrb[0].mxu0
    %v702 = vadd.f32 0.0, %v701
    %v703 = vpop.f32.mrb[0].mxu0
    %v704 = vpop.f32.mrb[0].mxu0
    %v705 = vadd.f32 0.0, %v704
    %v706 = vpop.f32.mrb[0].mxu0
    %707 = vmatprep.mubr.bf16.mxu0 0
    %708 = vmatmul.mubr.bf16.gmra.mrb[0].mxu0 %v411
    %v709 = vpop.f32.mrb[0].mxu0
    %v710 = vadd.f32 0.0, %v709
    %v711 = vpop.f32.mrb[0].mxu0
    %v712 = vpop.f32.mrb[0].mxu0
    %v713 = vadd.f32 0.0, %v712
    %v714 = vpop.f32.mrb[0].mxu0
    %715 = vmatprep.mubr.bf16.mxu0 0
    %716 = vmatmul.mubr.bf16.gmra.mrb[0].mxu0 %v412
    %v717 = vpop.f32.mrb[0].mxu0
    %v718 = vadd.f32 0.0, %v717
    %v719 = vpop.f32.mrb[0].mxu0
    %v720 = vpop.f32.mrb[0].mxu0
    %v721 = vadd.f32 0.0, %v720
    %v722 = vpop.f32.mrb[0].mxu0
    %723 = vmatprep.mubr.bf16.mxu0 0
    %724 = vmatmul.mubr.bf16.gmra.mrb[0].mxu0 %v413
    %v725 = vpop.f32.mrb[0].mxu0
    %v726 = vadd.f32 0.0, %v725
    %v727 = vpop.f32.mrb[0].mxu0
    %v728 = vpop.f32.mrb[0].mxu0
    %v729 = vadd.f32 0.0, %v728
    %v730 = vpop.f32.mrb[0].mxu0
    %731 = vmatprep.mubr.bf16.mxu0 0
    %732 = vmatmul.mubr.bf16.gmra.mrb[0].mxu0 %v414
    %v733 = vpop.f32.mrb[0].mxu0
    %v734 = vadd.f32 0.0, %v733
    %v735 = vpop.f32.mrb[0].mxu0
    %v736 = vpop.f32.mrb[0].mxu0
    %v737 = vadd.f32 0.0, %v736
    %v738 = vpop.f32.mrb[0].mxu0
    %739 = vmatprep.mubr.bf16.mxu0 0
    %740 = vmatmul.mubr.bf16.gmra.mrb[0].mxu0 %v415
    %v741 = vpop.f32.mrb[0].mxu0
    %v742 = vadd.f32 0.0, %v741
    %v743 = vpop.f32.mrb[0].mxu0
    %v744 = vpop.f32.mrb[0].mxu0
    %v745 = vadd.f32 0.0, %v744
    %v746 = vpop.f32.mrb[0].mxu0
    %747 = vmatprep.mubr.bf16.mxu0 0
    %748 = vmatmul.mubr.bf16.gmra.mrb[0].mxu0 %v416
    %v749 = vpop.f32.mrb[0].mxu0
    %v750 = vadd.f32 0.0, %v749
    %v751 = vpop.f32.mrb[0].mxu0
    %v752 = vpop.f32.mrb[0].mxu0
    %v753 = vadd.f32 0.0, %v752
    %v754 = vpop.f32.mrb[0].mxu0
    %755 = vmatprep.mubr.bf16.mxu0 0
    %756 = vmatmul.mubr.bf16.gmra.mrb[0].mxu0 %v417
    %v757 = vpop.f32.mrb[0].mxu0
    %v758 = vadd.f32 0.0, %v757
    %v759 = vpop.f32.mrb[0].mxu0
    %v760 = vpop.f32.mrb[0].mxu0
    %v761 = vadd.f32 0.0, %v760
    %v762 = vpop.f32.mrb[0].mxu0
    %763 = vmatprep.mubr.bf16.mxu0 0
    %764 = vmatmul.mubr.bf16.gmra.mrb[0].mxu0 %v418
    %v765 = vpop.f32.mrb[0].mxu0
    %v766 = vadd.f32 0.0, %v765
    %v767 = vpop.f32.mrb[0].mxu0
    %v768 = vpop.f32.mrb[0].mxu0
    %v769 = vadd.f32 0.0, %v768
    %v770 = vpop.f32.mrb[0].mxu0
    %771 = vdwg.mxu0
    %v772 = vld [vmem:[%s4] sm:$0x1]
    %v774 = vlaneseq
    %v775 = vshrl.u32 %v774, 7
    %v776 = vsub.s32 0, %v775
    %v777 = vrot.slane %v772, %v776
    %v779 = vmul.f32 %v518, %v777
    %v780 = vmul.f32 %v521, %v777
    %v781 = vmul.f32 %v526, %v777
    %v782 = vmul.f32 %v529, %v777
    %v783 = vmul.f32 %v534, %v777
    %v784 = vmul.f32 %v537, %v777
    %v785 = vmul.f32 %v542, %v777
    %v786 = vmul.f32 %v545, %v777
    %v787 = vmul.f32 %v550, %v777
    %v788 = vmul.f32 %v553, %v777
    %v789 = vmul.f32 %v558, %v777
    %v790 = vmul.f32 %v561, %v777
    %v791 = vmul.f32 %v566, %v777
    %v792 = vmul.f32 %v569, %v777
    %v793 = vmul.f32 %v574, %v777
    %v794 = vmul.f32 %v577, %v777
    %v795 = vmul.f32 %v582, %v777
    %v796 = vmul.f32 %v585, %v777
    %v797 = vmul.f32 %v590, %v777
    %v798 = vmul.f32 %v593, %v777
    %v799 = vmul.f32 %v598, %v777
    %v800 = vmul.f32 %v601, %v777
    %v801 = vmul.f32 %v606, %v777
    %v802 = vmul.f32 %v609, %v777
    %v803 = vmul.f32 %v614, %v777
    %v804 = vmul.f32 %v617, %v777
    %v805 = vmul.f32 %v622, %v777
    %v806 = vmul.f32 %v625, %v777
    %v807 = vmul.f32 %v630, %v777
    %v808 = vmul.f32 %v633, %v777
    %v809 = vmul.f32 %v638, %v777
    %v810 = vmul.f32 %v641, %v777
    %v811 = vmul.f32 %v646, %v777
    %v812 = vmul.f32 %v649, %v777
    %v813 = vmul.f32 %v654, %v777
    %v814 = vmul.f32 %v657, %v777
    %v815 = vmul.f32 %v662, %v777
    %v816 = vmul.f32 %v665, %v777
    %v817 = vmul.f32 %v670, %v777
    %v818 = vmul.f32 %v673, %v777
    %v819 = vmul.f32 %v678, %v777
    %v820 = vmul.f32 %v681, %v777
    %v821 = vmul.f32 %v686, %v777
    %v822 = vmul.f32 %v689, %v777
    %v823 = vmul.f32 %v694, %v777
    %v824 = vmul.f32 %v697, %v777
    %v825 = vmul.f32 %v702, %v777
    %v826 = vmul.f32 %v705, %v777
    %v827 = vmul.f32 %v710, %v777
    %v828 = vmul.f32 %v713, %v777
    %v829 = vmul.f32 %v718, %v777
    %v830 = vmul.f32 %v721, %v777
    %v831 = vmul.f32 %v726, %v777
    %v832 = vmul.f32 %v729, %v777
    %v833 = vmul.f32 %v734, %v777
    %v834 = vmul.f32 %v737, %v777
    %v835 = vmul.f32 %v742, %v777
    %v836 = vmul.f32 %v745, %v777
    %v837 = vmul.f32 %v750, %v777
    %v838 = vmul.f32 %v753, %v777
    %v839 = vmul.f32 %v758, %v777
    %v840 = vmul.f32 %v761, %v777
    %v841 = vmul.f32 %v766, %v777
    %v842 = vmul.f32 %v769, %v777
    %v843 = vld [vmem:[%s5] sm:$0x1]
    %v845 = vlaneseq
    %v846 = vshrl.u32 %v845, 7
    %v847 = vsub.s32 0, %v846
    %v848 = vrot.slane %v843, %v847
    %v850 = vadd.f32 %v779, %v848
    %v851 = vadd.f32 %v780, %v848
    %v852 = vadd.f32 %v781, %v848
    %v853 = vadd.f32 %v782, %v848
    %v854 = vadd.f32 %v783, %v848
    %v855 = vadd.f32 %v784, %v848
    %v856 = vadd.f32 %v785, %v848
    %v857 = vadd.f32 %v786, %v848
    %v858 = vadd.f32 %v787, %v848
    %v859 = vadd.f32 %v788, %v848
    %v860 = vadd.f32 %v789, %v848
    %v861 = vadd.f32 %v790, %v848
    %v862 = vadd.f32 %v791, %v848
    %v863 = vadd.f32 %v792, %v848
    %v864 = vadd.f32 %v793, %v848
    %v865 = vadd.f32 %v794, %v848
    %v866 = vadd.f32 %v795, %v848
    %v867 = vadd.f32 %v796, %v848
    %v868 = vadd.f32 %v797, %v848
    %v869 = vadd.f32 %v798, %v848
    %v870 = vadd.f32 %v799, %v848
    %v871 = vadd.f32 %v800, %v848
    %v872 = vadd.f32 %v801, %v848
    %v873 = vadd.f32 %v802, %v848
    %v874 = vadd.f32 %v803, %v848
    %v875 = vadd.f32 %v804, %v848
    %v876 = vadd.f32 %v805, %v848
    %v877 = vadd.f32 %v806, %v848
    %v878 = vadd.f32 %v807, %v848
    %v879 = vadd.f32 %v808, %v848
    %v880 = vadd.f32 %v809, %v848
    %v881 = vadd.f32 %v810, %v848
    %v882 = vadd.f32 %v811, %v848
    %v883 = vadd.f32 %v812, %v848
    %v884 = vadd.f32 %v813, %v848
    %v885 = vadd.f32 %v814, %v848
    %v886 = vadd.f32 %v815, %v848
    %v887 = vadd.f32 %v816, %v848
    %v888 = vadd.f32 %v817, %v848
    %v889 = vadd.f32 %v818, %v848
    %v890 = vadd.f32 %v819, %v848
    %v891 = vadd.f32 %v820, %v848
    %v892 = vadd.f32 %v821, %v848
    %v893 = vadd.f32 %v822, %v848
    %v894 = vadd.f32 %v823, %v848
    %v895 = vadd.f32 %v824, %v848
    %v896 = vadd.f32 %v825, %v848
    %v897 = vadd.f32 %v826, %v848
    %v898 = vadd.f32 %v827, %v848
    %v899 = vadd.f32 %v828, %v848
    %v900 = vadd.f32 %v829, %v848
    %v901 = vadd.f32 %v830, %v848
    %v902 = vadd.f32 %v831, %v848
    %v903 = vadd.f32 %v832, %v848
    %v904 = vadd.f32 %v833, %v848
    %v905 = vadd.f32 %v834, %v848
    %v906 = vadd.f32 %v835, %v848
    %v907 = vadd.f32 %v836, %v848
    %v908 = vadd.f32 %v837, %v848
    %v909 = vadd.f32 %v838, %v848
    %v910 = vadd.f32 %v839, %v848
    %v911 = vadd.f32 %v840, %v848
    %v912 = vadd.f32 %v841, %v848
    %v913 = vadd.f32 %v842, %v848
    %v914 = vmax.f32 %v850, 0.0
    %v915 = vmax.f32 %v851, 0.0
    %v916 = vmax.f32 %v852, 0.0
    %v917 = vmax.f32 %v853, 0.0
    %v918 = vmax.f32 %v854, 0.0
    %v919 = vmax.f32 %v855, 0.0
    %v920 = vmax.f32 %v856, 0.0
    %v921 = vmax.f32 %v857, 0.0
    %v922 = vmax.f32 %v858, 0.0
    %v923 = vmax.f32 %v859, 0.0
    %v924 = vmax.f32 %v860, 0.0
    %v925 = vmax.f32 %v861, 0.0
    %v926 = vmax.f32 %v862, 0.0
    %v927 = vmax.f32 %v863, 0.0
    %v928 = vmax.f32 %v864, 0.0
    %v929 = vmax.f32 %v865, 0.0
    %v930 = vmax.f32 %v866, 0.0
    %v931 = vmax.f32 %v867, 0.0
    %v932 = vmax.f32 %v868, 0.0
    %v933 = vmax.f32 %v869, 0.0
    %v934 = vmax.f32 %v870, 0.0
    %v935 = vmax.f32 %v871, 0.0
    %v936 = vmax.f32 %v872, 0.0
    %v937 = vmax.f32 %v873, 0.0
    %v938 = vmax.f32 %v874, 0.0
    %v939 = vmax.f32 %v875, 0.0
    %v940 = vmax.f32 %v876, 0.0
    %v941 = vmax.f32 %v877, 0.0
    %v942 = vmax.f32 %v878, 0.0
    %v943 = vmax.f32 %v879, 0.0
    %v944 = vmax.f32 %v880, 0.0
    %v945 = vmax.f32 %v881, 0.0
    %v946 = vmax.f32 %v882, 0.0
    %v947 = vmax.f32 %v883, 0.0
    %v948 = vmax.f32 %v884, 0.0
    %v949 = vmax.f32 %v885, 0.0
    %v950 = vmax.f32 %v886, 0.0
    %v951 = vmax.f32 %v887, 0.0
    %v952 = vmax.f32 %v888, 0.0
    %v953 = vmax.f32 %v889, 0.0
    %v954 = vmax.f32 %v890, 0.0
    %v955 = vmax.f32 %v891, 0.0
    %v956 = vmax.f32 %v892, 0.0
    %v957 = vmax.f32 %v893, 0.0
    %v958 = vmax.f32 %v894, 0.0
    %v959 = vmax.f32 %v895, 0.0
    %v960 = vmax.f32 %v896, 0.0
    %v961 = vmax.f32 %v897, 0.0
    %v962 = vmax.f32 %v898, 0.0
    %v963 = vmax.f32 %v899, 0.0
    %v964 = vmax.f32 %v900, 0.0
    %v965 = vmax.f32 %v901, 0.0
    %v966 = vmax.f32 %v902, 0.0
    %v967 = vmax.f32 %v903, 0.0
    %v968 = vmax.f32 %v904, 0.0
    %v969 = vmax.f32 %v905, 0.0
    %v970 = vmax.f32 %v906, 0.0
    %v971 = vmax.f32 %v907, 0.0
    %v972 = vmax.f32 %v908, 0.0
    %v973 = vmax.f32 %v909, 0.0
    %v974 = vmax.f32 %v910, 0.0
    %v975 = vmax.f32 %v911, 0.0
    %v976 = vmax.f32 %v912, 0.0
    %v977 = vmax.f32 %v913, 0.0
    %v978 = vpack.c.bf16 %v915, %v914
    %v979 = vpack.c.bf16 %v917, %v916
    %v980 = vpack.c.bf16 %v919, %v918
    %v981 = vpack.c.bf16 %v921, %v920
    %v982 = vpack.c.bf16 %v923, %v922
    %v983 = vpack.c.bf16 %v925, %v924
    %v984 = vpack.c.bf16 %v927, %v926
    %v985 = vpack.c.bf16 %v929, %v928
    %v986 = vpack.c.bf16 %v931, %v930
    %v987 = vpack.c.bf16 %v933, %v932
    %v988 = vpack.c.bf16 %v935, %v934
    %v989 = vpack.c.bf16 %v937, %v936
    %v990 = vpack.c.bf16 %v939, %v938
    %v991 = vpack.c.bf16 %v941, %v940
    %v992 = vpack.c.bf16 %v943, %v942
    %v993 = vpack.c.bf16 %v945, %v944
    %v994 = vpack.c.bf16 %v947, %v946
    %v995 = vpack.c.bf16 %v949, %v948
    %v996 = vpack.c.bf16 %v951, %v950
    %v997 = vpack.c.bf16 %v953, %v952
    %v998 = vpack.c.bf16 %v955, %v954
    %v999 = vpack.c.bf16 %v957, %v956
    %v1000 = vpack.c.bf16 %v959, %v958
    %v1001 = vpack.c.bf16 %v961, %v960
    %v1002 = vpack.c.bf16 %v963, %v962
    %v1003 = vpack.c.bf16 %v965, %v964
    %v1004 = vpack.c.bf16 %v967, %v966
    %v1005 = vpack.c.bf16 %v969, %v968
    %v1006 = vpack.c.bf16 %v971, %v970
    %v1007 = vpack.c.bf16 %v973, %v972
    %v1008 = vpack.c.bf16 %v975, %v974
    %v1009 = vpack.c.bf16 %v977, %v976
    %v1042 = vunpack.c.l.b16 %v978
    %v1043 = vunpack.c.h.b16 %v978
    %v1044 = vunpack.c.l.b16 %v979
    %v1045 = vunpack.c.h.b16 %v979
    %v1046 = vunpack.c.l.b16 %v980
    %v1047 = vunpack.c.h.b16 %v980
    %v1048 = vunpack.c.l.b16 %v981
    %v1049 = vunpack.c.h.b16 %v981
    %v1050 = vunpack.c.l.b16 %v982
    %v1051 = vunpack.c.h.b16 %v982
    %v1052 = vunpack.c.l.b16 %v983
    %v1053 = vunpack.c.h.b16 %v983
    %v1054 = vunpack.c.l.b16 %v984
    %v1055 = vunpack.c.h.b16 %v984
    %v1056 = vunpack.c.l.b16 %v985
    %v1057 = vunpack.c.h.b16 %v985
    %v1058 = vunpack.c.l.b16 %v986
    %v1059 = vunpack.c.h.b16 %v986
    %v1060 = vunpack.c.l.b16 %v987
    %v1061 = vunpack.c.h.b16 %v987
    %v1062 = vunpack.c.l.b16 %v988
    %v1063 = vunpack.c.h.b16 %v988
    %v1064 = vunpack.c.l.b16 %v989
    %v1065 = vunpack.c.h.b16 %v989
    %v1066 = vunpack.c.l.b16 %v990
    %v1067 = vunpack.c.h.b16 %v990
    %v1068 = vunpack.c.l.b16 %v991
    %v1069 = vunpack.c.h.b16 %v991
    %v1070 = vunpack.c.l.b16 %v992
    %v1071 = vunpack.c.h.b16 %v992
    %v1072 = vunpack.c.l.b16 %v993
    %v1073 = vunpack.c.h.b16 %v993
    %v1074 = vunpack.c.l.b16 %v994
    %v1075 = vunpack.c.h.b16 %v994
    %v1076 = vunpack.c.l.b16 %v995
    %v1077 = vunpack.c.h.b16 %v995
    %v1078 = vunpack.c.l.b16 %v996
    %v1079 = vunpack.c.h.b16 %v996
    %v1080 = vunpack.c.l.b16 %v997
    %v1081 = vunpack.c.h.b16 %v997
    %v1082 = vunpack.c.l.b16 %v998
    %v1083 = vunpack.c.h.b16 %v998
    %v1084 = vunpack.c.l.b16 %v999
    %v1085 = vunpack.c.h.b16 %v999
    %v1086 = vunpack.c.l.b16 %v1000
    %v1087 = vunpack.c.h.b16 %v1000
    %v1088 = vunpack.c.l.b16 %v1001
    %v1089 = vunpack.c.h.b16 %v1001
    %v1090 = vunpack.c.l.b16 %v1002
    %v1091 = vunpack.c.h.b16 %v1002
    %v1092 = vunpack.c.l.b16 %v1003
    %v1093 = vunpack.c.h.b16 %v1003
    %v1094 = vunpack.c.l.b16 %v1004
    %v1095 = vunpack.c.h.b16 %v1004
    %v1096 = vunpack.c.l.b16 %v1005
    %v1097 = vunpack.c.h.b16 %v1005
    %v1098 = vunpack.c.l.b16 %v1006
    %v1099 = vunpack.c.h.b16 %v1006
    %v1100 = vunpack.c.l.b16 %v1007
    %v1101 = vunpack.c.h.b16 %v1007
    %v1102 = vunpack.c.l.b16 %v1008
    %v1103 = vunpack.c.h.b16 %v1008
    %v1104 = vunpack.c.l.b16 %v1009
    %v1105 = vunpack.c.h.b16 %v1009
    %v1106 = vpack.c.b16 %v1042, %v1042
    %v1107 = vpack.c.b16 %v1043, %v1043
    %v1108 = vpack.c.b16 %v1044, %v1044
    %v1109 = vpack.c.b16 %v1045, %v1045
    %v1110 = vpack.c.b16 %v1046, %v1046
    %v1111 = vpack.c.b16 %v1047, %v1047
    %v1112 = vpack.c.b16 %v1048, %v1048
    %v1113 = vpack.c.b16 %v1049, %v1049
    %v1114 = vpack.c.b16 %v1050, %v1050
    %v1115 = vpack.c.b16 %v1051, %v1051
    %v1116 = vpack.c.b16 %v1052, %v1052
    %v1117 = vpack.c.b16 %v1053, %v1053
    %v1118 = vpack.c.b16 %v1054, %v1054
    %v1119 = vpack.c.b16 %v1055, %v1055
    %v1120 = vpack.c.b16 %v1056, %v1056
    %v1121 = vpack.c.b16 %v1057, %v1057
    %v1122 = vpack.c.b16 %v1058, %v1058
    %v1123 = vpack.c.b16 %v1059, %v1059
    %v1124 = vpack.c.b16 %v1060, %v1060
    %v1125 = vpack.c.b16 %v1061, %v1061
    %v1126 = vpack.c.b16 %v1062, %v1062
    %v1127 = vpack.c.b16 %v1063, %v1063
    %v1128 = vpack.c.b16 %v1064, %v1064
    %v1129 = vpack.c.b16 %v1065, %v1065
    %v1130 = vpack.c.b16 %v1066, %v1066
    %v1131 = vpack.c.b16 %v1067, %v1067
    %v1132 = vpack.c.b16 %v1068, %v1068
    %v1133 = vpack.c.b16 %v1069, %v1069
    %v1134 = vpack.c.b16 %v1070, %v1070
    %v1135 = vpack.c.b16 %v1071, %v1071
    %v1136 = vpack.c.b16 %v1072, %v1072
    %v1137 = vpack.c.b16 %v1073, %v1073
    %v1138 = vpack.c.b16 %v1074, %v1074
    %v1139 = vpack.c.b16 %v1075, %v1075
    %v1140 = vpack.c.b16 %v1076, %v1076
    %v1141 = vpack.c.b16 %v1077, %v1077
    %v1142 = vpack.c.b16 %v1078, %v1078
    %v1143 = vpack.c.b16 %v1079, %v1079
    %v1144 = vpack.c.b16 %v1080, %v1080
    %v1145 = vpack.c.b16 %v1081, %v1081
    %v1146 = vpack.c.b16 %v1082, %v1082
    %v1147 = vpack.c.b16 %v1083, %v1083
    %v1148 = vpack.c.b16 %v1084, %v1084
    %v1149 = vpack.c.b16 %v1085, %v1085
    %v1150 = vpack.c.b16 %v1086, %v1086
    %v1151 = vpack.c.b16 %v1087, %v1087
    %v1152 = vpack.c.b16 %v1088, %v1088
    %v1153 = vpack.c.b16 %v1089, %v1089
    %v1154 = vpack.c.b16 %v1090, %v1090
    %v1155 = vpack.c.b16 %v1091, %v1091
    %v1156 = vpack.c.b16 %v1092, %v1092
    %v1157 = vpack.c.b16 %v1093, %v1093
    %v1158 = vpack.c.b16 %v1094, %v1094
    %v1159 = vpack.c.b16 %v1095, %v1095
    %v1160 = vpack.c.b16 %v1096, %v1096
    %v1161 = vpack.c.b16 %v1097, %v1097
    %v1162 = vpack.c.b16 %v1098, %v1098
    %v1163 = vpack.c.b16 %v1099, %v1099
    %v1164 = vpack.c.b16 %v1100, %v1100
    %v1165 = vpack.c.b16 %v1101, %v1101
    %v1166 = vpack.c.b16 %v1102, %v1102
    %v1167 = vpack.c.b16 %v1103, %v1103
    %v1168 = vpack.c.b16 %v1104, %v1104
    %v1169 = vpack.c.b16 %v1105, %v1105
    %1234 = vst [vmem:[#allocation7] sm:$0xf] %v1106
    %1235 = vst [vmem:[#allocation7 + $0x4] sm:$0xf] %v1107
    %1236 = vst [vmem:[#allocation7 + $0x8] sm:$0xf] %v1108
    %1237 = vst [vmem:[#allocation7 + $0xc] sm:$0xf] %v1109
    %1238 = vst [vmem:[#allocation7 + $0x10] sm:$0xf] %v1110
    %1239 = vst [vmem:[#allocation7 + $0x14] sm:$0xf] %v1111
    %1240 = vst [vmem:[#allocation7 + $0x18] sm:$0xf] %v1112
    %1241 = vst [vmem:[#allocation7 + $0x1c] sm:$0xf] %v1113
    %1242 = vst [vmem:[#allocation7 + $0x20] sm:$0xf] %v1114
    %1243 = vst [vmem:[#allocation7 + $0x24] sm:$0xf] %v1115
    %1244 = vst [vmem:[#allocation7 + $0x28] sm:$0xf] %v1116
    %1245 = vst [vmem:[#allocation7 + $0x2c] sm:$0xf] %v1117
    %1246 = vst [vmem:[#allocation7 + $0x30] sm:$0xf] %v1118
    %1247 = vst [vmem:[#allocation7 + $0x34] sm:$0xf] %v1119
    %1248 = vst [vmem:[#allocation7 + $0x38] sm:$0xf] %v1120
    %1249 = vst [vmem:[#allocation7 + $0x3c] sm:$0xf] %v1121
    %1250 = vst [vmem:[#allocation7 + $0x40] sm:$0xf] %v1122
    %1251 = vst [vmem:[#allocation7 + $0x44] sm:$0xf] %v1123
    %1252 = vst [vmem:[#allocation7 + $0x48] sm:$0xf] %v1124
    %1253 = vst [vmem:[#allocation7 + $0x4c] sm:$0xf] %v1125
    %1254 = vst [vmem:[#allocation7 + $0x50] sm:$0xf] %v1126
    %1255 = vst [vmem:[#allocation7 + $0x54] sm:$0xf] %v1127
    %1256 = vst [vmem:[#allocation7 + $0x58] sm:$0xf] %v1128
    %1257 = vst [vmem:[#allocation7 + $0x5c] sm:$0xf] %v1129
    %1258 = vst [vmem:[#allocation7 + $0x60] sm:$0xf] %v1130
    %1259 = vst [vmem:[#allocation7 + $0x64] sm:$0xf] %v1131
    %1260 = vst [vmem:[#allocation7 + $0x68] sm:$0xf] %v1132
    %1261 = vst [vmem:[#allocation7 + $0x6c] sm:$0xf] %v1133
    %1262 = vst [vmem:[#allocation7 + $0x70] sm:$0xf] %v1134
    %1263 = vst [vmem:[#allocation7 + $0x74] sm:$0xf] %v1135
    %1264 = vst [vmem:[#allocation7 + $0x78] sm:$0xf] %v1136
    %1265 = vst [vmem:[#allocation7 + $0x7c] sm:$0xf] %v1137
    %1266 = vst [vmem:[#allocation7 + $0x80] sm:$0xf] %v1138
    %1267 = vst [vmem:[#allocation7 + $0x84] sm:$0xf] %v1139
    %1268 = vst [vmem:[#allocation7 + $0x88] sm:$0xf] %v1140
    %1269 = vst [vmem:[#allocation7 + $0x8c] sm:$0xf] %v1141
    %1270 = vst [vmem:[#allocation7 + $0x90] sm:$0xf] %v1142
    %1271 = vst [vmem:[#allocation7 + $0x94] sm:$0xf] %v1143
    %1272 = vst [vmem:[#allocation7 + $0x98] sm:$0xf] %v1144
    %1273 = vst [vmem:[#allocation7 + $0x9c] sm:$0xf] %v1145
    %1274 = vst [vmem:[#allocation7 + $0xa0] sm:$0xf] %v1146
    %1275 = vst [vmem:[#allocation7 + $0xa4] sm:$0xf] %v1147
    %1276 = vst [vmem:[#allocation7 + $0xa8] sm:$0xf] %v1148
    %1277 = vst [vmem:[#allocation7 + $0xac] sm:$0xf] %v1149
    %1278 = vst [vmem:[#allocation7 + $0xb0] sm:$0xf] %v1150
    %1279 = vst [vmem:[#allocation7 + $0xb4] sm:$0xf] %v1151
    %1280 = vst [vmem:[#allocation7 + $0xb8] sm:$0xf] %v1152
    %1281 = vst [vmem:[#allocation7 + $0xbc] sm:$0xf] %v1153
    %1282 = vst [vmem:[#allocation7 + $0xc0] sm:$0xf] %v1154
    %1283 = vst [vmem:[#allocation7 + $0xc4] sm:$0xf] %v1155
    %1284 = vst [vmem:[#allocation7 + $0xc8] sm:$0xf] %v1156
    %1285 = vst [vmem:[#allocation7 + $0xcc] sm:$0xf] %v1157
    %1286 = vst [vmem:[#allocation7 + $0xd0] sm:$0xf] %v1158
    %1287 = vst [vmem:[#allocation7 + $0xd4] sm:$0xf] %v1159
    %1288 = vst [vmem:[#allocation7 + $0xd8] sm:$0xf] %v1160
    %1289 = vst [vmem:[#allocation7 + $0xdc] sm:$0xf] %v1161
    %1290 = vst [vmem:[#allocation7 + $0xe0] sm:$0xf] %v1162
    %1291 = vst [vmem:[#allocation7 + $0xe4] sm:$0xf] %v1163
    %1292 = vst [vmem:[#allocation7 + $0xe8] sm:$0xf] %v1164
    %1293 = vst [vmem:[#allocation7 + $0xec] sm:$0xf] %v1165
    %1294 = vst [vmem:[#allocation7 + $0xf0] sm:$0xf] %v1166
    %1295 = vst [vmem:[#allocation7 + $0xf4] sm:$0xf] %v1167
    %1296 = vst [vmem:[#allocation7 + $0xf8] sm:$0xf] %v1168
    %1297 = vst [vmem:[#allocation7 + $0xfc] sm:$0xf] %v1169
    // Predicated region
    $region34: #{tpu_custom_call.1} parent=1 // pred_check
      _
    $region35: #{tpu_custom_call.1} parent=1 // pred_check_branch
      %1299 = sbr.rel (0) target = $region37
    $region36: #{tpu_custom_call.1} parent=1 // pred_region
      %s1301 = ssub.s32 4096, 4096
      %1302 = vsyncadd [#allocation4], %s1301
      %s1303 = sshll.u32 [#allocation7], 4
      %s1304 = int_to_ptr.vmem [resolvable:$true] %s1303
      %1309 = dma.vmem_to_hbm [thread:$0]  %s1304, 4096, %s6, [#allocation4], 64, 64, 4
    $region37: #{tpu_custom_call.1} parent=1 // pred_fallthru
      _
    // Predicated region
    $region38: #{tpu_custom_call.1} parent=1 // pred_check
      _
    $region39: #{tpu_custom_call.1} parent=1 // pred_check_branch
      %1311 = sbr.rel (0) target = $region41
    $region40: #{tpu_custom_call.1} parent=1 // pred_region
      %1312 = dma.done [#allocation4], 4096
    $region41: #{tpu_custom_call.1} parent=1 // pred_fallthru
      _
    %1313 = vsyncpa [#allocation3], 1
    %1314 = vsyncpa [#allocation6], 1
    %1315 = vsyncpa [#allocation4], 1

</llo_original>
